<compile_context>
chip_gen: v7x
topology: tpu7x:2x2x1
jax: 0.10.0
libtpu: 0.0.40
codegen_flags: <defaults>
</compile_context>

<pallas_src>
import functools

import jax
import jax.numpy as jnp
import numpy as np
from jax.experimental import pallas as pl
from jax.experimental.pallas import tpu as pltpu

DROP_OUT = 0.7

try:  # current naming
    _VMEM_SPACE = pltpu.MemorySpace.VMEM
except AttributeError:  # pragma: no cover - older jax naming
    _VMEM_SPACE = pltpu.TPUMemorySpace.VMEM


def _round_up(v, m):
    return (v + m - 1) // m * m


# ----------------------------------------------------------------------------
# Single fused Pallas kernel: conv1 -> ReLU -> conv2 -> mean-nodes -> Linear.
# ----------------------------------------------------------------------------
def _rgcn_fused_kernel(x_ref, a_ref, p_ref, o_ref, *,
                       n, num_rels, in_dim, h_dim, out_dim, num_classes,
                       off_w1, off_w2, off_b1, off_b2, off_fcw, off_fcb):
    a = a_ref[...]                       # (R*N, N) bf16, row r*N+v = A_r^T[v, :]
    x = x_ref[...]                       # (N, in)  bf16 node features

    # --- unpack the f32 parameter slab (static, 8-row-aligned offsets) ---
    w1 = p_ref[off_w1:off_w1 + num_rels * in_dim, :h_dim]     # (R*in, h)
    w2 = p_ref[off_w2:off_w2 + num_rels * h_dim, :out_dim]    # (R*h, out)
    b1 = p_ref[off_b1:off_b1 + 1, :h_dim]                     # (1, h)
    b2 = p_ref[off_b2:off_b2 + 1, :out_dim]                   # (1, out)
    fcw = p_ref[off_fcw:off_fcw + out_dim, :num_classes]      # (out, 2)
    fcb = p_ref[off_fcb:off_fcb + 1, :num_classes]            # (1, 2)

    # ---- layer 1: h1 = ReLU( sum_r (A_r^T @ X) @ W1_r + b1 )
    # one bf16 MXU aggregation over ALL relations at once (K-dense, single dot)
    y = jnp.dot(a, x, preferred_element_type=jnp.float32)              # (R*N, in) f32
    # regroup relation row-blocks into lane-blocks of the contraction dim
    # (R static slice copies; r*n is a multiple of the f32 sublane pack 8)
    y_cat = jnp.concatenate(
        [y[r * n:(r + 1) * n, :] for r in range(num_rels)], axis=1)    # (N, R*in)
    h1 = jnp.dot(y_cat, w1, preferred_element_type=jnp.float32) + b1   # (N, h)
    h1 = jnp.maximum(h1, 0.0)

    # ---- layer 2: h2 = sum_r (A_r^T @ h1) @ W2_r + b2  (same 2-matmul structure)
    y2 = jnp.dot(a, h1.astype(a.dtype), preferred_element_type=jnp.float32)  # (R*N, h)
    y2_cat = jnp.concatenate(
        [y2[r * n:(r + 1) * n, :] for r in range(num_rels)], axis=1)   # (N, R*h)
    h2 = jnp.dot(y2_cat, w2, preferred_element_type=jnp.float32) + b2  # (N, out)
    # F.dropout -> identity (inference semantics)

    # ---- mean-node readout (dgl.mean_nodes) + Linear(out_dim, 2)
    hg = jnp.mean(h2, axis=0, keepdims=True)                           # (1, out)
    o_ref[...] = (jnp.dot(hg, fcw, preferred_element_type=jnp.float32)
                  + fcb).astype(o_ref.dtype)


def rgcn_forward(params, features, adj_t):
    """features: (N, in_dim) f32; adj_t: (R, N, N) with adj_t[r, v, u] = #edges
    u->v of relation r.  Returns logits of shape (1, 2)."""
    num_rels, n, _ = adj_t.shape
    in_dim = features.shape[1]
    h_dim = params["basis1"].shape[2]
    out_dim = params["basis2"].shape[2]
    num_classes = params["fc_w"].shape[1]

    # basis-regularized relation weights: W_r = sum_b coeff[r, b] * basis[b]
    w1 = jnp.einsum("rb,bio->rio", params["coeff1"], params["basis1"])  # (R, in, h)
    w2 = jnp.einsum("rb,bio->rio", params["coeff2"], params["basis2"])  # (R, h, out)
    w1_rows = w1.reshape(num_rels * in_dim, h_dim)    # row r*in+i = W1_r[i, :]
    w2_rows = w2.reshape(num_rels * h_dim, out_dim)   # row r*h+i  = W2_r[i, :]

    # stacked adjacency, bf16 (edge counts are exactly representable in bf16):
    # row r*N + v holds A_r^T[v, :]   -- the only O(R*N^2) DMA, now half-width
    a_stack = adj_t.reshape(num_rels * n, n).astype(jnp.bfloat16)
    x_bf16 = features.astype(jnp.bfloat16)

    # ---- pack all small parameters into ONE (rows, 128) f32 slab ----
    lane = 128
    assert max(h_dim, out_dim, num_classes) <= lane, \
        "TODO(synk): pad feature dims in the wrapper for wider models"
    off_w1 = 0
    off_w2 = _round_up(off_w1 + num_rels * in_dim, 8)
    off_b1 = _round_up(off_w2 + num_rels * h_dim, 8)
    off_b2 = off_b1 + 8
    off_fcw = off_b2 + 8
    off_fcb = _round_up(off_fcw + out_dim, 8)
    rows = _round_up(off_fcb + 1, 8)

    slab = jnp.zeros((rows, lane), jnp.float32)
    slab = slab.at[off_w1:off_w1 + num_rels * in_dim, :h_dim].set(w1_rows)
    slab = slab.at[off_w2:off_w2 + num_rels * h_dim, :out_dim].set(w2_rows)
    slab = slab.at[off_b1, :h_dim].set(params["bias1"].reshape(h_dim))
    slab = slab.at[off_b2, :out_dim].set(params["bias2"].reshape(out_dim))
    slab = slab.at[off_fcw:off_fcw + out_dim, :num_classes].set(params["fc_w"])
    slab = slab.at[off_fcb, :num_classes].set(params["fc_b"].reshape(num_classes))

    kernel = functools.partial(
        _rgcn_fused_kernel,
        n=n, num_rels=num_rels, in_dim=in_dim, h_dim=h_dim, out_dim=out_dim,
        num_classes=num_classes,
        off_w1=off_w1, off_w2=off_w2, off_b1=off_b1, off_b2=off_b2,
        off_fcw=off_fcw, off_fcb=off_fcb)

    flops = (2 * num_rels * n * n * (in_dim + h_dim)      # adjacency aggregations
             + 2 * n * num_rels * in_dim * h_dim          # stacked weight matmuls
             + 2 * n * num_rels * h_dim * out_dim
             + 2 * out_dim * num_classes)
    bytes_accessed = (a_stack.size * 2 + x_bf16.size * 2
                      + slab.size * 4 + num_classes * 4)

    return pl.pallas_call(
        kernel,
        out_shape=jax.ShapeDtypeStruct((1, num_classes), jnp.float32),
        in_specs=[pl.BlockSpec(memory_space=_VMEM_SPACE)] * 3,
        out_specs=pl.BlockSpec(memory_space=_VMEM_SPACE),
        cost_estimate=pl.CostEstimate(flops=flops, transcendentals=0,
                                      bytes_accessed=bytes_accessed),
    )(x_bf16, a_stack, slab)


def rgcn_reference(params, features, adj_t):
    """Pure-JAX f32 reference for correctness checking."""
    w1 = jnp.einsum("rb,bio->rio", params["coeff1"], params["basis1"])
    w2 = jnp.einsum("rb,bio->rio", params["coeff2"], params["basis2"])
    h = jnp.einsum("rvu,uf,rfo->vo", adj_t, features, w1) + params["bias1"]
    h = jnp.maximum(h, 0.0)
    h = jnp.einsum("rvu,uf,rfo->vo", adj_t, h, w2) + params["bias2"]
    hg = jnp.mean(h, axis=0, keepdims=True)
    return hg @ params["fc_w"] + params["fc_b"]


if __name__ == "__main__":
    # small synthetic graph / dims
    N = 16            # nodes
    E = 48            # edges
    in_dim, h_dim, out_dim, num_rels = 8, 16, 8, 3
    num_bases = num_rels  # num_bases == num_rels per the module

    key = jax.random.PRNGKey(0)
    ks = jax.random.split(key, 12)

    features = jax.random.normal(ks[0], (N, in_dim), dtype=jnp.float32)
    src = jax.random.randint(ks[1], (E,), 0, N)
    dst = jax.random.randint(ks[2], (E,), 0, N)
    etypes = jax.random.randint(ks[3], (E,), 0, num_rels)

    # dense per-relation adjacency, pre-transposed: adj_t[r, v, u] = #edges u->v of rel r
    adj_t = jnp.zeros((num_rels, N, N), dtype=jnp.float32).at[etypes, dst, src].add(1.0)

    # deterministic parameter init (shapes from RelGraphConv basis decomposition + nn.Linear)
    params = {
        "basis1": 0.1 * jax.random.normal(ks[4], (num_bases, in_dim, h_dim), jnp.float32),
        "coeff1": 0.1 * jax.random.normal(ks[5], (num_rels, num_bases), jnp.float32),
        "bias1": 0.1 * jax.random.normal(ks[6], (1, h_dim), jnp.float32),
        "basis2": 0.1 * jax.random.normal(ks[7], (num_bases, h_dim, out_dim), jnp.float32),
        "coeff2": 0.1 * jax.random.normal(ks[8], (num_rels, num_bases), jnp.float32),
        "bias2": 0.1 * jax.random.normal(ks[9], (1, out_dim), jnp.float32),
        "fc_w": 0.1 * jax.random.normal(ks[10], (out_dim, 2), jnp.float32),
        "fc_b": 0.1 * jax.random.normal(ks[11], (1, 2), jnp.float32),
    }

    out = jax.jit(rgcn_forward)(params, features, adj_t)
    out = jax.block_until_ready(out)

    ref = rgcn_reference(params, features, adj_t)
    # bf16 activations/adjacency on the MXU path -> looser tolerance than pure f32
    np.testing.assert_allclose(np.asarray(out), np.asarray(ref), rtol=2e-2, atol=1e-3)
    assert out.shape == (1, 2)

    print("KERNEL_OK")
</pallas_src>

<mosaic_0001>
module attributes {stable_mosaic.version = 11 : i64} {
  func.func @_rgcn_fused_kernel(%arg0: memref<16x8xbf16, #tpu.memory_space<vmem>>, %arg1: memref<48x16xbf16, #tpu.memory_space<vmem>>, %arg2: memref<104x128xf32, #tpu.memory_space<vmem>>, %arg3: memref<1x2xf32, #tpu.memory_space<vmem>>) attributes {dimension_semantics = [], scalar_prefetch = 0 : i64, scratch_operands = 0 : i64, tpu.core_type = #tpu.core_type<tc>} {
    %c0 = arith.constant 0 : index
    %c0_0 = arith.constant 0 : index
    %0 = vector.load %arg1[%c0, %c0_0] : memref<48x16xbf16, #tpu.memory_space<vmem>>, vector<48x16xbf16>
    %c0_1 = arith.constant 0 : index
    %c0_2 = arith.constant 0 : index
    %1 = vector.load %arg0[%c0_1, %c0_2] : memref<16x8xbf16, #tpu.memory_space<vmem>>, vector<16x8xbf16>
    %c0_3 = arith.constant 0 : index
    %c0_4 = arith.constant 0 : index
    %2 = vector.load %arg2[%c0_3, %c0_4] : memref<104x128xf32, #tpu.memory_space<vmem>>, vector<24x16xf32>
    %c24 = arith.constant 24 : index
    %c0_5 = arith.constant 0 : index
    %3 = vector.load %arg2[%c24, %c0_5] : memref<104x128xf32, #tpu.memory_space<vmem>>, vector<48x8xf32>
    %c72 = arith.constant 72 : index
    %c0_6 = arith.constant 0 : index
    %4 = vector.load %arg2[%c72, %c0_6] : memref<104x128xf32, #tpu.memory_space<vmem>>, vector<1x16xf32>
    %c80 = arith.constant 80 : index
    %c0_7 = arith.constant 0 : index
    %5 = vector.load %arg2[%c80, %c0_7] : memref<104x128xf32, #tpu.memory_space<vmem>>, vector<1x8xf32>
    %c88 = arith.constant 88 : index
    %c0_8 = arith.constant 0 : index
    %6 = vector.load %arg2[%c88, %c0_8] : memref<104x128xf32, #tpu.memory_space<vmem>>, vector<8x2xf32>
    %c96 = arith.constant 96 : index
    %c0_9 = arith.constant 0 : index
    %7 = vector.load %arg2[%c96, %c0_9] : memref<104x128xf32, #tpu.memory_space<vmem>>, vector<1x2xf32>
    %cst = arith.constant dense<0.000000e+00> : vector<48x8xf32>
    %8 = tpu.matmul %0, %1, %cst {dimension_numbers = #tpu.dot_dimension_numbers<[1], [0], [0], [1], [0, 0, 1, 1], [], []>} : vector<48x16xbf16>, vector<16x8xbf16>, vector<48x8xf32> -> vector<48x8xf32>
    %9 = vector.extract_strided_slice %8 {offsets = [0, 0], sizes = [16, 8], strides = [1, 1]} : vector<48x8xf32> to vector<16x8xf32>
    %10 = vector.extract_strided_slice %8 {offsets = [16, 0], sizes = [16, 8], strides = [1, 1]} : vector<48x8xf32> to vector<16x8xf32>
    %11 = vector.extract_strided_slice %8 {offsets = [32, 0], sizes = [16, 8], strides = [1, 1]} : vector<48x8xf32> to vector<16x8xf32>
    %12 = tpu.concatenate %9, %10, %11 in 1 : vector<16x8xf32>, vector<16x8xf32>, vector<16x8xf32> -> vector<16x24xf32>
    %cst_10 = arith.constant dense<0.000000e+00> : vector<16x16xf32>
    %13 = tpu.matmul %12, %2, %cst_10 {dimension_numbers = #tpu.dot_dimension_numbers<[1], [0], [0], [1], [0, 0, 1, 1], [], []>} : vector<16x24xf32>, vector<24x16xf32>, vector<16x16xf32> -> vector<16x16xf32>
    %14 = vector.broadcast %4 : vector<1x16xf32> to vector<16x16xf32>
    %15 = arith.addf %13, %14 : vector<16x16xf32>
    %cst_11 = arith.constant 0.000000e+00 : f32
    %16 = vector.broadcast %cst_11 : f32 to vector<16x16xf32>
    %17 = arith.maximumf %15, %16 : vector<16x16xf32>
    %18 = arith.truncf %17 : vector<16x16xf32> to vector<16x16xbf16>
    %cst_12 = arith.constant dense<0.000000e+00> : vector<48x16xf32>
    %19 = tpu.matmul %0, %18, %cst_12 {dimension_numbers = #tpu.dot_dimension_numbers<[1], [0], [0], [1], [0, 0, 1, 1], [], []>} : vector<48x16xbf16>, vector<16x16xbf16>, vector<48x16xf32> -> vector<48x16xf32>
    %20 = vector.extract_strided_slice %19 {offsets = [0, 0], sizes = [16, 16], strides = [1, 1]} : vector<48x16xf32> to vector<16x16xf32>
    %21 = vector.extract_strided_slice %19 {offsets = [16, 0], sizes = [16, 16], strides = [1, 1]} : vector<48x16xf32> to vector<16x16xf32>
    %22 = vector.extract_strided_slice %19 {offsets = [32, 0], sizes = [16, 16], strides = [1, 1]} : vector<48x16xf32> to vector<16x16xf32>
    %23 = tpu.concatenate %20, %21, %22 in 1 : vector<16x16xf32>, vector<16x16xf32>, vector<16x16xf32> -> vector<16x48xf32>
    %cst_13 = arith.constant dense<0.000000e+00> : vector<16x8xf32>
    %24 = tpu.matmul %23, %3, %cst_13 {dimension_numbers = #tpu.dot_dimension_numbers<[1], [0], [0], [1], [0, 0, 1, 1], [], []>} : vector<16x48xf32>, vector<48x8xf32>, vector<16x8xf32> -> vector<16x8xf32>
    %25 = vector.broadcast %5 : vector<1x8xf32> to vector<16x8xf32>
    %26 = arith.addf %24, %25 : vector<16x8xf32>
    %cst_14 = arith.constant dense<0.000000e+00> : vector<8xf32>
    %27 = vector.multi_reduction <add>, %26, %cst_14 [0] : vector<16x8xf32> to vector<8xf32>
    %28 = vector.shape_cast %27 : vector<8xf32> to vector<1x8xf32>
    %cst_15 = arith.constant 1.600000e+01 : f32
    %29 = vector.broadcast %cst_15 : f32 to vector<1x8xf32>
    %30 = arith.divf %28, %29 : vector<1x8xf32>
    %cst_16 = arith.constant dense<0.000000e+00> : vector<1x2xf32>
    %31 = tpu.matmul %30, %6, %cst_16 {dimension_numbers = #tpu.dot_dimension_numbers<[1], [0], [0], [1], [0, 0, 1, 1], [], []>} : vector<1x8xf32>, vector<8x2xf32>, vector<1x2xf32> -> vector<1x2xf32>
    %32 = arith.addf %31, %7 : vector<1x2xf32>
    %c0_17 = arith.constant 0 : index
    %c0_18 = arith.constant 0 : index
    %33 = vector.load %arg3[%c0_17, %c0_18] : memref<1x2xf32, #tpu.memory_space<vmem>>, vector<1x2xf32>
    tpu.vector_store %arg3[%c0_17, %c0_18], %32 {strides = array<i32>} : memref<1x2xf32, #tpu.memory_space<vmem>>, vector<1x2xf32>,
    return
  }
}

</mosaic_0001>

<llo_original>
// kernel: rgcn_forward.1
$region0: #{rgcn_forward.1}
  #allocation0 [shape = 'u32[]', space=smem, size = 0x4, offset = 0x4, fixed_abs, tag = 'smem constant byte address 0x4 - core index']
  #allocation1 [shape = 'u32[144,128]{1,0:T(1,128)}', space=vmem, size = 0x12000, scoped, tag = 'internal scratch']
  %s0 = inlined_call_operand.vmem [shape: bf16[16,8], index: 0, kind: input, shape index: {}]
  %s1 = inlined_call_operand.vmem [shape: bf16[48,16], index: 1, kind: input, shape index: {}]
  %s2 = inlined_call_operand.vmem [shape: f32[104,128], index: 2, kind: input, shape index: {}]
  %s3 = inlined_call_operand.hbm [shape: f32[1,2], index: 3, kind: output, shape index: {}]
  %s4 = sld [smem:[#allocation0]]
  $region22: #{rgcn_forward.1} parent=0
    _
  %s6 = ssub.s32 1, %s4
  %s7 = scalar_select 0, %s6, %s4
  $region1: #{rgcn_forward.1} parent=0
    #allocation2 [shape = 'u8[512]{0}', space=vmem, size = 0x400, scoped, tag = 'output window, operand 0, single buffered']
    #allocation3 [shape = 's32[1]{0}', space=sflag, size = 0x4, scoped, tag = 'scoped memory for rgcn_forward.1']
    %8 = vsyncpa [#allocation3], 0
    // Predicated region
    $region2: #{rgcn_forward.1} parent=1 // pred_check
      _
    $region3: #{rgcn_forward.1} parent=1 // pred_check_branch
      %10 = sbr.rel (0) target = $region5
    $region4: #{rgcn_forward.1} parent=1 // pred_region
      _
    $region5: #{rgcn_forward.1} parent=1 // pred_fallthru
      _
    // Predicated region
    $region6: #{rgcn_forward.1} parent=1 // pred_check
      _
    $region7: #{rgcn_forward.1} parent=1 // pred_check_branch
      %12 = sbr.rel (0) target = $region9
    $region8: #{rgcn_forward.1} parent=1 // pred_region
      _
    $region9: #{rgcn_forward.1} parent=1 // pred_fallthru
      _
    // Predicated region
    $region10: #{rgcn_forward.1} parent=1 // pred_check
      _
    $region11: #{rgcn_forward.1} parent=1 // pred_check_branch
      %14 = sbr.rel (0) target = $region13
    $region12: #{rgcn_forward.1} parent=1 // pred_region
      _
    $region13: #{rgcn_forward.1} parent=1 // pred_fallthru
      _
    %v16 = vld [vmem:[%s1] sm:$0xf]
    %v17 = vld [vmem:[%s1 + $0x4] sm:$0xf]
    %v18 = vld [vmem:[%s1 + $0x8] sm:$0xf]
    %v19 = vld [vmem:[%s1 + $0xc] sm:$0xf]
    %v20 = vld [vmem:[%s1 + $0x10] sm:$0xf]
    %v21 = vld [vmem:[%s1 + $0x14] sm:$0xf]
    %v22 = vld [vmem:[%s0] sm:$0xf]
    %v23 = vld [vmem:[%s0 + $0x4] sm:$0xf]
    %v24 = vld [vmem:[%s2] sm:$0xff]
    %v25 = vld [vmem:[%s2 + $0x8] sm:$0xff]
    %v26 = vld [vmem:[%s2 + $0x10] sm:$0xff]
    %v27 = vld [vmem:[%s2 + $0x18] sm:$0xff]
    %v28 = vld [vmem:[%s2 + $0x20] sm:$0xff]
    %v29 = vld [vmem:[%s2 + $0x28] sm:$0xff]
    %v30 = vld [vmem:[%s2 + $0x30] sm:$0xff]
    %v31 = vld [vmem:[%s2 + $0x38] sm:$0xff]
    %v32 = vld [vmem:[%s2 + $0x40] sm:$0xff]
    %v33 = vld [vmem:[%s2 + $0x48] sm:$0x1]
    %v34 = vld [vmem:[%s2 + $0x50] sm:$0x1]
    %v35 = vld [vmem:[%s2 + $0x58] sm:$0xff]
    %v36 = vld [vmem:[%s2 + $0x60] sm:$0x1]
    %v43 = vunpack.c.l.b16 %v16
    %v44 = vunpack.c.l.b16 %v17
    %v45 = vunpack.c.l.b16 %v18
    %v46 = vunpack.c.l.b16 %v19
    %v47 = vunpack.c.l.b16 %v20
    %v48 = vunpack.c.l.b16 %v21
    %v49 = vpack.c.b16 %v44, %v43
    %v50 = vpack.c.b16 %v46, %v45
    %v51 = vpack.c.b16 %v48, %v47
    %v54 = vunpack.c.l.b16 %v22
    %v55 = vunpack.c.l.b16 %v23
    %v56 = vpack.c.b16 %v55, %v54
    %vm58 = vcmask 130048
    %v60 = vsel %vm58, %v49, 0
    %v63 = vsel %vm58, %v50, 0
    %v66 = vsel %vm58, %v51, 0
    %68 = vmatprep.subr.bf16.mxu0 0
    %69 = vmatpush1.bf16.msra.mxu0 %v56
    %70 = vmatprep.subr.bf16.mxu0 0
    %71 = vmatpush1.bf16.msra.mxu0 0
    %72 = vmatprep.subr.bf16.mxu0 0
    %73 = vmatpush1.bf16.msra.mxu0 0
    %74 = vmatprep.subr.bf16.mxu0 0
    %75 = vmatpush1.bf16.msra.mxu0 0
    %76 = vmatprep.subr.bf16.mxu0 0
    %77 = vmatpush1.bf16.msra.mxu0 0
    %78 = vmatprep.subr.bf16.mxu0 0
    %79 = vmatpush1.bf16.msra.mxu0 0
    %80 = vmatprep.subr.bf16.mxu0 0
    %81 = vmatpush1.bf16.msra.mxu0 0
    %82 = vmatprep.subr.bf16.mxu0 0
    %83 = vmatpush1.bf16.msra.mxu0 0
    %84 = vmatprep.subr.bf16.mxu0 0
    %85 = vmatpush1.bf16.msra.mxu0 0
    %86 = vmatprep.subr.bf16.mxu0 0
    %87 = vmatpush1.bf16.msra.mxu0 0
    %88 = vmatprep.subr.bf16.mxu0 0
    %89 = vmatpush1.bf16.msra.mxu0 0
    %90 = vmatprep.subr.bf16.mxu0 0
    %91 = vmatpush1.bf16.msra.mxu0 0
    %92 = vmatprep.subr.bf16.mxu0 0
    %93 = vmatpush1.bf16.msra.mxu0 0
    %94 = vmatprep.subr.bf16.mxu0 0
    %95 = vmatpush1.bf16.msra.mxu0 0
    %96 = vmatprep.subr.bf16.mxu0 0
    %97 = vmatpush1.bf16.msra.mxu0 0
    %98 = vmatprep.subr.bf16.mxu0 0
    %99 = vmatpush1.bf16.msra.mxu0 0
    %100 = vmatprep.mubr.bf16.mxu0 0
    %101 = vmatmul.mubr.bf16.gmra.mrb[0].mxu0 %v60
    %v102 = vpop.f32.mrb[0].mxu0
    %v103 = vadd.f32 0.0, %v102
    %v104 = vpop.f32.mrb[0].mxu0
    %v105 = vpop.f32.mrb[0].mxu0
    %v106 = vadd.f32 0.0, %v105
    %v107 = vpop.f32.mrb[0].mxu0
    %108 = vmatprep.mubr.bf16.mxu0 0
    %109 = vmatmul.mubr.bf16.gmra.mrb[0].mxu0 %v63
    %v110 = vpop.f32.mrb[0].mxu0
    %v111 = vadd.f32 0.0, %v110
    %v112 = vpop.f32.mrb[0].mxu0
    %v113 = vpop.f32.mrb[0].mxu0
    %v114 = vadd.f32 0.0, %v113
    %v115 = vpop.f32.mrb[0].mxu0
    %116 = vmatprep.mubr.bf16.mxu0 0
    %117 = vmatmul.mubr.bf16.gmra.mrb[0].mxu0 %v66
    %v118 = vpop.f32.mrb[0].mxu0
    %v119 = vadd.f32 0.0, %v118
    %v120 = vpop.f32.mrb[0].mxu0
    %v121 = vpop.f32.mrb[0].mxu0
    %v122 = vadd.f32 0.0, %v121
    %v123 = vpop.f32.mrb[0].mxu0
    %124 = vdwg.mxu0
    %127 = vrot.lane.b32.xlu0 %v111, 8
    %v128 = vpop.permute.xlu0 %127
    %129 = vrot.lane.b32.xlu0 %v114, 8
    %v130 = vpop.permute.xlu0 %129
    %135 = vrot.lane.b32.xlu0 %v119, 16
    %v136 = vpop.permute.xlu0 %135
    %137 = vrot.lane.b32.xlu0 %v122, 16
    %v138 = vpop.permute.xlu0 %137
    %vm141 = vcmask 64512
    %v142 = vsel %vm141, %v103, %v128
    %v143 = vsel %vm141, %v106, %v130
    %v144 = vsel %vm58, %v142, %v136
    %v145 = vsel %vm58, %v143, %v138
    %v146 = vlaneseq
    %v147 = vshrl.u32 %v146, 7
    %v148 = vsub.s32 0, %v147
    %v149 = vrot.slane %v33, %v148
    %vm150 = vcmask 195584
    %v152 = vsel %vm150, %v144, 0
    %v155 = vsel %vm150, %v145, 0
    %157 = vmatprep.subr.mxu0 0.0
    %158 = vmatpush1.msra.mxu0 %v24
    %159 = vmatprep.subr.mxu0 0.0
    %160 = vmatpush1.msra.mxu0 %v25
    %161 = vmatprep.subr.mxu0 0.0
    %162 = vmatpush1.msra.mxu0 %v26
    %163 = vmatprep.subr.mxu0 0.0
    %164 = vmatpush1.msra.mxu0 0.0
    %165 = vmatprep.subr.mxu0 0.0
    %166 = vmatpush1.msra.mxu0 0.0
    %167 = vmatprep.subr.mxu0 0.0
    %168 = vmatpush1.msra.mxu0 0.0
    %169 = vmatprep.subr.mxu0 0.0
    %170 = vmatpush1.msra.mxu0 0.0
    %171 = vmatprep.subr.mxu0 0.0
    %172 = vmatpush1.msra.mxu0 0.0
    %173 = vmatprep.subr.mxu0 0.0
    %174 = vmatpush1.msra.mxu0 0.0
    %175 = vmatprep.subr.mxu0 0.0
    %176 = vmatpush1.msra.mxu0 0.0
    %177 = vmatprep.subr.mxu0 0.0
    %178 = vmatpush1.msra.mxu0 0.0
    %179 = vmatprep.subr.mxu0 0.0
    %180 = vmatpush1.msra.mxu0 0.0
    %181 = vmatprep.subr.mxu0 0.0
    %182 = vmatpush1.msra.mxu0 0.0
    %183 = vmatprep.subr.mxu0 0.0
    %184 = vmatpush1.msra.mxu0 0.0
    %185 = vmatprep.subr.mxu0 0.0
    %186 = vmatpush1.msra.mxu0 0.0
    %187 = vmatprep.subr.mxu0 0.0
    %188 = vmatpush1.msra.mxu0 0.0
    %189 = vmatprep.subr.mxu0 0.0
    %190 = vmatpush1.msra.mxu0 0.0
    %191 = vmatprep.subr.mxu0 0.0
    %192 = vmatpush1.msra.mxu0 0.0
    %193 = vmatprep.subr.mxu0 0.0
    %194 = vmatpush1.msra.mxu0 0.0
    %195 = vmatprep.subr.mxu0 0.0
    %196 = vmatpush1.msra.mxu0 0.0
    %197 = vmatprep.subr.mxu0 0.0
    %198 = vmatpush1.msra.mxu0 0.0
    %199 = vmatprep.subr.mxu0 0.0
    %200 = vmatpush1.msra.mxu0 0.0
    %201 = vmatprep.subr.mxu0 0.0
    %202 = vmatpush1.msra.mxu0 0.0
    %203 = vmatprep.subr.mxu0 0.0
    %204 = vmatpush1.msra.mxu0 0.0
    %205 = vmatprep.subr.mxu0 0.0
    %206 = vmatpush1.msra.mxu0 0.0
    %207 = vmatprep.subr.mxu0 0.0
    %208 = vmatpush1.msra.mxu0 0.0
    %209 = vmatprep.subr.mxu0 0.0
    %210 = vmatpush1.msra.mxu0 0.0
    %211 = vmatprep.subr.mxu0 0.0
    %212 = vmatpush1.msra.mxu0 0.0
    %213 = vmatprep.subr.mxu0 0.0
    %214 = vmatpush1.msra.mxu0 0.0
    %215 = vmatprep.subr.mxu0 0.0
    %216 = vmatpush1.msra.mxu0 0.0
    %217 = vmatprep.subr.mxu0 0.0
    %218 = vmatpush1.msra.mxu0 0.0
    %219 = vmatprep.subr.mxu0 0.0
    %220 = vmatpush1.msra.mxu0 0.0
    %221 = vmatprep.mubr.f32.mxu0 0.0
    %222 = vmatmul.mubr.f32.gmra.mrb[0].mxu0 %v152
    %v223 = vpop.f32.mrb[0].mxu0
    %v224 = vadd.f32 %v149, %v223
    %v225 = vpop.f32.mrb[0].mxu0
    %226 = vmatprep.mubr.f32.mxu0 0.0
    %227 = vmatmul.mubr.f32.gmra.mrb[0].mxu0 %v155
    %v228 = vpop.f32.mrb[0].mxu0
    %v229 = vadd.f32 %v149, %v228
    %v230 = vpop.f32.mrb[0].mxu0
    %231 = vdwg.mxu0
    %v232 = vmax.f32 %v224, 0.0
    %v233 = vmax.f32 %v229, 0.0
    %v234 = vpack.c.bf16 %v233, %v232
    %235 = vmatprep.subr.bf16.mxu0 0
    %236 = vmatpush1.bf16.msra.mxu0 %v234
    %237 = vmatprep.subr.bf16.mxu0 0
    %238 = vmatpush1.bf16.msra.mxu0 0
    %239 = vmatprep.subr.bf16.mxu0 0
    %240 = vmatpush1.bf16.msra.mxu0 0
    %241 = vmatprep.subr.bf16.mxu0 0
    %242 = vmatpush1.bf16.msra.mxu0 0
    %243 = vmatprep.subr.bf16.mxu0 0
    %244 = vmatpush1.bf16.msra.mxu0 0
    %245 = vmatprep.subr.bf16.mxu0 0
    %246 = vmatpush1.bf16.msra.mxu0 0
    %247 = vmatprep.subr.bf16.mxu0 0
    %248 = vmatpush1.bf16.msra.mxu0 0
    %249 = vmatprep.subr.bf16.mxu0 0
    %250 = vmatpush1.bf16.msra.mxu0 0
    %251 = vmatprep.subr.bf16.mxu0 0
    %252 = vmatpush1.bf16.msra.mxu0 0
    %253 = vmatprep.subr.bf16.mxu0 0
    %254 = vmatpush1.bf16.msra.mxu0 0
    %255 = vmatprep.subr.bf16.mxu0 0
    %256 = vmatpush1.bf16.msra.mxu0 0
    %257 = vmatprep.subr.bf16.mxu0 0
    %258 = vmatpush1.bf16.msra.mxu0 0
    %259 = vmatprep.subr.bf16.mxu0 0
    %260 = vmatpush1.bf16.msra.mxu0 0
    %261 = vmatprep.subr.bf16.mxu0 0
    %262 = vmatpush1.bf16.msra.mxu0 0
    %263 = vmatprep.subr.bf16.mxu0 0
    %264 = vmatpush1.bf16.msra.mxu0 0
    %265 = vmatprep.subr.bf16.mxu0 0
    %266 = vmatpush1.bf16.msra.mxu0 0
    %267 = vmatprep.mubr.bf16.mxu0 0
    %268 = vmatmul.mubr.bf16.gmra.mrb[0].mxu0 %v60
    %v269 = vpop.f32.mrb[0].mxu0
    %v270 = vadd.f32 0.0, %v269
    %v271 = vpop.f32.mrb[0].mxu0
    %v272 = vpop.f32.mrb[0].mxu0
    %v273 = vadd.f32 0.0, %v272
    %v274 = vpop.f32.mrb[0].mxu0
    %275 = vmatprep.mubr.bf16.mxu0 0
    %276 = vmatmul.mubr.bf16.gmra.mrb[0].mxu0 %v63
    %v277 = vpop.f32.mrb[0].mxu0
    %v278 = vadd.f32 0.0, %v277
    %v279 = vpop.f32.mrb[0].mxu0
    %v280 = vpop.f32.mrb[0].mxu0
    %v281 = vadd.f32 0.0, %v280
    %v282 = vpop.f32.mrb[0].mxu0
    %283 = vmatprep.mubr.bf16.mxu0 0
    %284 = vmatmul.mubr.bf16.gmra.mrb[0].mxu0 %v66
    %v285 = vpop.f32.mrb[0].mxu0
    %v286 = vadd.f32 0.0, %v285
    %v287 = vpop.f32.mrb[0].mxu0
    %v288 = vpop.f32.mrb[0].mxu0
    %v289 = vadd.f32 0.0, %v288
    %v290 = vpop.f32.mrb[0].mxu0
    %291 = vdwg.mxu0
    %294 = vrot.lane.b32.xlu0 %v278, 16
    %v295 = vpop.permute.xlu0 %294
    %296 = vrot.lane.b32.xlu0 %v281, 16
    %v297 = vpop.permute.xlu0 %296
    %302 = vrot.lane.b32.xlu0 %v286, 32
    %v303 = vpop.permute.xlu0 %302
    %304 = vrot.lane.b32.xlu0 %v289, 32
    %v305 = vpop.permute.xlu0 %304
    %v308 = vsel %vm58, %v270, %v295
    %v309 = vsel %vm58, %v273, %v297
    %vm310 = vcmask 261120
    %v311 = vsel %vm310, %v308, %v303
    %v312 = vsel %vm310, %v309, %v305
    %v313 = vlaneseq
    %v314 = vshrl.u32 %v313, 7
    %v315 = vsub.s32 0, %v314
    %v316 = vrot.slane %v34, %v315
    %vm317 = vcmask 392192
    %v319 = vsel %vm317, %v311, 0
    %v322 = vsel %vm317, %v312, 0
    %324 = vmatprep.subr.mxu0 0.0
    %325 = vmatpush1.msra.mxu0 %v27
    %326 = vmatprep.subr.mxu0 0.0
    %327 = vmatpush1.msra.mxu0 %v28
    %328 = vmatprep.subr.mxu0 0.0
    %329 = vmatpush1.msra.mxu0 %v29
    %330 = vmatprep.subr.mxu0 0.0
    %331 = vmatpush1.msra.mxu0 %v30
    %332 = vmatprep.subr.mxu0 0.0
    %333 = vmatpush1.msra.mxu0 %v31
    %334 = vmatprep.subr.mxu0 0.0
    %335 = vmatpush1.msra.mxu0 %v32
    %336 = vmatprep.subr.mxu0 0.0
    %337 = vmatpush1.msra.mxu0 0.0
    %338 = vmatprep.subr.mxu0 0.0
    %339 = vmatpush1.msra.mxu0 0.0
    %340 = vmatprep.subr.mxu0 0.0
    %341 = vmatpush1.msra.mxu0 0.0
    %342 = vmatprep.subr.mxu0 0.0
    %343 = vmatpush1.msra.mxu0 0.0
    %344 = vmatprep.subr.mxu0 0.0
    %345 = vmatpush1.msra.mxu0 0.0
    %346 = vmatprep.subr.mxu0 0.0
    %347 = vmatpush1.msra.mxu0 0.0
    %348 = vmatprep.subr.mxu0 0.0
    %349 = vmatpush1.msra.mxu0 0.0
    %350 = vmatprep.subr.mxu0 0.0
    %351 = vmatpush1.msra.mxu0 0.0
    %352 = vmatprep.subr.mxu0 0.0
    %353 = vmatpush1.msra.mxu0 0.0
    %354 = vmatprep.subr.mxu0 0.0
    %355 = vmatpush1.msra.mxu0 0.0
    %356 = vmatprep.subr.mxu0 0.0
    %357 = vmatpush1.msra.mxu0 0.0
    %358 = vmatprep.subr.mxu0 0.0
    %359 = vmatpush1.msra.mxu0 0.0
    %360 = vmatprep.subr.mxu0 0.0
    %361 = vmatpush1.msra.mxu0 0.0
    %362 = vmatprep.subr.mxu0 0.0
    %363 = vmatpush1.msra.mxu0 0.0
    %364 = vmatprep.subr.mxu0 0.0
    %365 = vmatpush1.msra.mxu0 0.0
    %366 = vmatprep.subr.mxu0 0.0
    %367 = vmatpush1.msra.mxu0 0.0
    %368 = vmatprep.subr.mxu0 0.0
    %369 = vmatpush1.msra.mxu0 0.0
    %370 = vmatprep.subr.mxu0 0.0
    %371 = vmatpush1.msra.mxu0 0.0
    %372 = vmatprep.subr.mxu0 0.0
    %373 = vmatpush1.msra.mxu0 0.0
    %374 = vmatprep.subr.mxu0 0.0
    %375 = vmatpush1.msra.mxu0 0.0
    %376 = vmatprep.subr.mxu0 0.0
    %377 = vmatpush1.msra.mxu0 0.0
    %378 = vmatprep.subr.mxu0 0.0
    %379 = vmatpush1.msra.mxu0 0.0
    %380 = vmatprep.subr.mxu0 0.0
    %381 = vmatpush1.msra.mxu0 0.0
    %382 = vmatprep.subr.mxu0 0.0
    %383 = vmatpush1.msra.mxu0 0.0
    %384 = vmatprep.subr.mxu0 0.0
    %385 = vmatpush1.msra.mxu0 0.0
    %386 = vmatprep.subr.mxu0 0.0
    %387 = vmatpush1.msra.mxu0 0.0
    %388 = vmatprep.mubr.f32.mxu0 0.0
    %389 = vmatmul.mubr.f32.gmra.mrb[0].mxu0 %v319
    %v390 = vpop.f32.mrb[0].mxu0
    %v391 = vadd.f32 %v316, %v390
    %v392 = vpop.f32.mrb[0].mxu0
    %393 = vmatprep.mubr.f32.mxu0 0.0
    %394 = vmatmul.mubr.f32.gmra.mrb[0].mxu0 %v322
    %v395 = vpop.f32.mrb[0].mxu0
    %v396 = vadd.f32 %v316, %v395
    %v397 = vpop.f32.mrb[0].mxu0
    %398 = vdwg.mxu0
    %v399 = vsel %vm141, %v391, 0.0
    %v400 = vsel %vm141, %v396, 0.0
    %v401 = vadd.f32 %v399, %v400
    %v402 = vrot.slane %v401, 4
    %v403 = vadd.f32 %v401, %v402
    %v404 = vrot.slane %v403, 2
    %v405 = vadd.f32 %v403, %v404
    %v406 = vrot.slane %v405, 1
    %v407 = vadd.f32 %v405, %v406
    %v408 = vrcp.pop 16.0
    %v409 = vmul.f32 %v407, %v408
    %v411 = vsel %vm141, %v409, 0
    %413 = vmatprep.subr.mxu0 0.0
    %414 = vmatpush1.msra.mxu0 %v35
    %415 = vmatprep.subr.mxu0 0.0
    %416 = vmatpush1.msra.mxu0 0.0
    %417 = vmatprep.subr.mxu0 0.0
    %418 = vmatpush1.msra.mxu0 0.0
    %419 = vmatprep.subr.mxu0 0.0
    %420 = vmatpush1.msra.mxu0 0.0
    %421 = vmatprep.subr.mxu0 0.0
    %422 = vmatpush1.msra.mxu0 0.0
    %423 = vmatprep.subr.mxu0 0.0
    %424 = vmatpush1.msra.mxu0 0.0
    %425 = vmatprep.subr.mxu0 0.0
    %426 = vmatpush1.msra.mxu0 0.0
    %427 = vmatprep.subr.mxu0 0.0
    %428 = vmatpush1.msra.mxu0 0.0
    %429 = vmatprep.subr.mxu0 0.0
    %430 = vmatpush1.msra.mxu0 0.0
    %431 = vmatprep.subr.mxu0 0.0
    %432 = vmatpush1.msra.mxu0 0.0
    %433 = vmatprep.subr.mxu0 0.0
    %434 = vmatpush1.msra.mxu0 0.0
    %435 = vmatprep.subr.mxu0 0.0
    %436 = vmatpush1.msra.mxu0 0.0
    %437 = vmatprep.subr.mxu0 0.0
    %438 = vmatpush1.msra.mxu0 0.0
    %439 = vmatprep.subr.mxu0 0.0
    %440 = vmatpush1.msra.mxu0 0.0
    %441 = vmatprep.subr.mxu0 0.0
    %442 = vmatpush1.msra.mxu0 0.0
    %443 = vmatprep.subr.mxu0 0.0
    %444 = vmatpush1.msra.mxu0 0.0
    %445 = vmatprep.subr.mxu0 0.0
    %446 = vmatpush1.msra.mxu0 0.0
    %447 = vmatprep.subr.mxu0 0.0
    %448 = vmatpush1.msra.mxu0 0.0
    %449 = vmatprep.subr.mxu0 0.0
    %450 = vmatpush1.msra.mxu0 0.0
    %451 = vmatprep.subr.mxu0 0.0
    %452 = vmatpush1.msra.mxu0 0.0
    %453 = vmatprep.subr.mxu0 0.0
    %454 = vmatpush1.msra.mxu0 0.0
    %455 = vmatprep.subr.mxu0 0.0
    %456 = vmatpush1.msra.mxu0 0.0
    %457 = vmatprep.subr.mxu0 0.0
    %458 = vmatpush1.msra.mxu0 0.0
    %459 = vmatprep.subr.mxu0 0.0
    %460 = vmatpush1.msra.mxu0 0.0
    %461 = vmatprep.subr.mxu0 0.0
    %462 = vmatpush1.msra.mxu0 0.0
    %463 = vmatprep.subr.mxu0 0.0
    %464 = vmatpush1.msra.mxu0 0.0
    %465 = vmatprep.subr.mxu0 0.0
    %466 = vmatpush1.msra.mxu0 0.0
    %467 = vmatprep.subr.mxu0 0.0
    %468 = vmatpush1.msra.mxu0 0.0
    %469 = vmatprep.subr.mxu0 0.0
    %470 = vmatpush1.msra.mxu0 0.0
    %471 = vmatprep.subr.mxu0 0.0
    %472 = vmatpush1.msra.mxu0 0.0
    %473 = vmatprep.subr.mxu0 0.0
    %474 = vmatpush1.msra.mxu0 0.0
    %475 = vmatprep.subr.mxu0 0.0
    %476 = vmatpush1.msra.mxu0 0.0
    %477 = vmatprep.mubr.f32.mxu0 0.0
    %478 = vmatmul.mubr.f32.gmra.mrb[0].mxu0 %v411
    %v479 = vpop.f32.mrb[0].mxu0
    %v480 = vadd.f32 %v36, %v479
    %v481 = vpop.f32.mrb[0].mxu0
    %482 = vdwg.mxu0
    %vm483 = vcmask 8192
    %484 = vst.msk [vmem:[#allocation2] sm:$0x1] %vm483, %v480
    // Predicated region
    $region14: #{rgcn_forward.1} parent=1 // pred_check
      _
    $region15: #{rgcn_forward.1} parent=1 // pred_check_branch
      %486 = sbr.rel (0) target = $region17
    $region16: #{rgcn_forward.1} parent=1 // pred_region
      %s488 = ssub.s32 16, 16
      %489 = vsyncadd [#allocation3], %s488
      %s491 = sshll.u32 [#allocation2], 4
      %s492 = int_to_ptr.vmem [resolvable:$true] %s491
      %494 = dma.vmem_to_hbm [thread:$0]  %s492, 16, %s3, [#allocation3]
    $region17: #{rgcn_forward.1} parent=1 // pred_fallthru
      _
    // Predicated region
    $region18: #{rgcn_forward.1} parent=1 // pred_check
      _
    $region19: #{rgcn_forward.1} parent=1 // pred_check_branch
      %496 = sbr.rel (0) target = $region21
    $region20: #{rgcn_forward.1} parent=1 // pred_region
      %497 = dma.done [#allocation3], 16
    $region21: #{rgcn_forward.1} parent=1 // pred_fallthru
      _
    %498 = vsyncpa [#allocation3], 1

</llo_original>
